<compile_context>
chip_gen: v7x
topology: tpu7x:2x2x1
jax: 0.10.0
libtpu: 0.0.40
codegen_flags: <defaults>
</compile_context>

<pallas_src>
import functools

import numpy as np
import jax
import jax.numpy as jnp
from jax.experimental import pallas as pl
from jax.experimental.pallas import tpu as pltpu


def _round_up(x, m):
    return ((x + m - 1) // m) * m


def _largest_tile(dim, prefs):
    for t in prefs:
        if dim % t == 0:
            return t
    return dim  # dim always divides itself


@functools.lru_cache(maxsize=1)
def _vmem_limit_bytes():
    """Generation-aware VMEM limit: ~96 MiB on v5e/v6e (128 MiB), ~48 MiB on v7x (64 MiB)."""
    cap = 64 * 1024 * 1024  # conservative default (v7x per-core)
    try:
        info = pltpu.get_tpu_info()
        c = getattr(info, "vmem_capacity_bytes", None)
        if c:
            cap = int(c)
    except Exception:
        pass
    return min((cap * 3) // 4, 100 * 1024 * 1024)


# ---------------------------------------------------------------------------
# Parameter preparation (done ONCE at module construction, not per forward)
# ---------------------------------------------------------------------------
def prepare_linear(w, b):
    """w: (K, N) f32, b: (N,) f32 -> bf16 weight padded to (Kp128, Np128),
    f32 bias padded to (1, Np128)."""
    K, N = w.shape
    Kp, Np = _round_up(K, 128), _round_up(N, 128)
    wp = w.astype(jnp.bfloat16)
    if (Kp, Np) != (K, N):
        wp = jnp.pad(wp, ((0, Kp - K), (0, Np - N)))
    bp = b.astype(jnp.float32).reshape(1, N)
    if Np != N:
        bp = jnp.pad(bp, ((0, 0), (0, Np - N)))
    return wp, bp


# ---------------------------------------------------------------------------
# Linear kernels:  y = x @ W + b   (optional ReLU)
# ---------------------------------------------------------------------------
def _linear_resident_kernel(x_ref, w_ref, b_ref, o_ref, *, apply_relu):
    # Full W/b resident in VMEM (constant index maps); grid over M only.
    y = jnp.dot(x_ref[...], w_ref[...], preferred_element_type=jnp.float32)
    y = y + b_ref[...]
    if apply_relu:
        y = jnp.maximum(y, 0.0)
    o_ref[...] = y.astype(o_ref.dtype)


def _linear_tiled_k1_kernel(x_ref, w_ref, b_ref, o_ref, *, apply_relu):
    # grid = (M, N); K fits one tile -> no accumulator scratch / pl.when.
    y = jnp.dot(x_ref[...], w_ref[...], preferred_element_type=jnp.float32) + b_ref[...]
    if apply_relu:
        y = jnp.maximum(y, 0.0)
    o_ref[...] = y.astype(o_ref.dtype)


def _linear_tiled_kernel(x_ref, w_ref, b_ref, o_ref, acc_ref, *, apply_relu):
    # grid = (M, N, K); f32 accumulator resident across the K (arbitrary) axis.
    k = pl.program_id(2)

    @pl.when(k == 0)
    def _():
        acc_ref[...] = jnp.zeros_like(acc_ref)

    acc_ref[...] += jnp.dot(x_ref[...], w_ref[...], preferred_element_type=jnp.float32)

    @pl.when(k == pl.num_programs(2) - 1)
    def _():
        y = acc_ref[...] + b_ref[...]
        if apply_relu:
            y = jnp.maximum(y, 0.0)
        o_ref[...] = y.astype(o_ref.dtype)


def linear_pallas(x2d, wp, bp, n_out, *, apply_relu=False, out_dtype=jnp.float32):
    """x2d: (M, K); wp: (Kp, Np) prepared bf16; bp: (1, Np) f32. Returns (M, n_out)."""
    M, K = x2d.shape
    Kp, Np = wp.shape
    assert K <= Kp

    vmem_limit = _vmem_limit_bytes()
    budget = int(vmem_limit * 0.9)
    out_isz = np.dtype(out_dtype).itemsize

    # Prefer full-weight residency (typical projection head): grid over M only.
    tm = min(512, _round_up(M, 16))
    resident_bytes = (2 * tm * Kp * 2        # x tile (bf16), double-buffered
                      + 2 * Kp * Np * 2      # W (bf16), counted double-buffered
                      + 2 * Np * 4           # bias (f32)
                      + 2 * tm * Np * out_isz)
    resident = resident_bytes <= budget
    if not resident:
        tm = min(256, _round_up(M, 16))

    Mp = _round_up(M, tm)
    xb = x2d if x2d.dtype == jnp.bfloat16 else x2d.astype(jnp.bfloat16)
    if Mp != M or Kp != K:
        xb = jnp.pad(xb, ((0, Mp - M), (0, Kp - K)))

    if resident:
        cost = pl.CostEstimate(
            flops=2 * Mp * Np * Kp,
            transcendentals=0,
            bytes_accessed=Mp * Kp * 2 + Kp * Np * 2 + Np * 4 + Mp * Np * out_isz,
        )
        out = pl.pallas_call(
            functools.partial(_linear_resident_kernel, apply_relu=apply_relu),
            out_shape=jax.ShapeDtypeStruct((Mp, Np), out_dtype),
            grid_spec=pltpu.PrefetchScalarGridSpec(
                num_scalar_prefetch=0,
                grid=(Mp // tm,),
                in_specs=[
                    pl.BlockSpec((tm, Kp), lambda i: (i, 0)),
                    pl.BlockSpec((Kp, Np), lambda i: (0, 0)),   # resident across M
                    pl.BlockSpec((1, Np), lambda i: (0, 0)),    # resident across M
                ],
                out_specs=pl.BlockSpec((tm, Np), lambda i: (i, 0)),
            ),
            compiler_params=pltpu.CompilerParams(
                dimension_semantics=("parallel",),
                vmem_limit_bytes=vmem_limit,
            ),
            cost_estimate=cost,
        )(xb, wp, bp)
    else:
        # Large weight: classic (M, N, K) tiling.
        tn = _largest_tile(Np, (512, 256, 128))
        tk = Kp if Kp <= 1024 else _largest_tile(Kp, (512, 256, 128))
        kgrid = Kp // tk
        cost = pl.CostEstimate(
            flops=2 * Mp * Np * Kp,
            transcendentals=0,
            bytes_accessed=(Mp * Kp * 2 * (Np // tn)      # x re-streamed per N tile
                            + Kp * Np * 2 * (Mp // tm)    # W re-streamed per M tile
                            + Np * 4 * (Mp // tm)
                            + Mp * Np * out_isz),
        )
        if kgrid == 1:
            out = pl.pallas_call(
                functools.partial(_linear_tiled_k1_kernel, apply_relu=apply_relu),
                out_shape=jax.ShapeDtypeStruct((Mp, Np), out_dtype),
                grid_spec=pltpu.PrefetchScalarGridSpec(
                    num_scalar_prefetch=0,
                    grid=(Mp // tm, Np // tn),
                    in_specs=[
                        pl.BlockSpec((tm, tk), lambda i, j: (i, 0)),
                        pl.BlockSpec((tk, tn), lambda i, j: (0, j)),
                        pl.BlockSpec((1, tn), lambda i, j: (0, j)),
                    ],
                    out_specs=pl.BlockSpec((tm, tn), lambda i, j: (i, j)),
                ),
                compiler_params=pltpu.CompilerParams(
                    dimension_semantics=("parallel", "parallel"),
                    vmem_limit_bytes=vmem_limit,
                ),
                cost_estimate=cost,
            )(xb, wp, bp)
        else:
            out = pl.pallas_call(
                functools.partial(_linear_tiled_kernel, apply_relu=apply_relu),
                out_shape=jax.ShapeDtypeStruct((Mp, Np), out_dtype),
                grid_spec=pltpu.PrefetchScalarGridSpec(
                    num_scalar_prefetch=0,
                    grid=(Mp // tm, Np // tn, kgrid),
                    in_specs=[
                        pl.BlockSpec((tm, tk), lambda i, j, k: (i, k)),
                        pl.BlockSpec((tk, tn), lambda i, j, k: (k, j)),
                        pl.BlockSpec((1, tn), lambda i, j, k: (0, j)),
                    ],
                    out_specs=pl.BlockSpec((tm, tn), lambda i, j, k: (i, j)),
                    scratch_shapes=[pltpu.VMEM((tm, tn), jnp.float32)],
                ),
                compiler_params=pltpu.CompilerParams(
                    dimension_semantics=("parallel", "parallel", "arbitrary"),
                    vmem_limit_bytes=vmem_limit,
                ),
                cost_estimate=cost,
            )(xb, wp, bp)

    if Mp != M or Np != n_out:
        out = out[:M, :n_out]
    return out


# ---------------------------------------------------------------------------
# Fused MLP kernels:  y = ReLU(x @ W1 + b1) @ W2 + b2   (hidden stays on-chip)
# ---------------------------------------------------------------------------
def _mlp_fused_kernel(x_ref, w1_ref, b1_ref, w2_ref, b2_ref, o_ref):
    # Full W1/W2 resident; hidden is fed straight into the second dot
    # (no explicit VMEM scratch round trip).
    h = jnp.dot(x_ref[...], w1_ref[...], preferred_element_type=jnp.float32)
    h = jnp.maximum(h + b1_ref[...], 0.0).astype(jnp.bfloat16)
    y = jnp.dot(h, w2_ref[...], preferred_element_type=jnp.float32) + b2_ref[...]
    o_ref[...] = y.astype(o_ref.dtype)


def _mlp_htiled_kernel(x_ref, w1_ref, b1_ref, w2_ref, b2_ref, o_ref, acc_ref):
    # Hidden dim tiled on grid axis 1; hidden chunk still never leaves the chip.
    hstep = pl.program_id(1)

    @pl.when(hstep == 0)
    def _():
        acc_ref[...] = jnp.zeros_like(acc_ref)

    h = jnp.dot(x_ref[...], w1_ref[...], preferred_element_type=jnp.float32)
    h = jnp.maximum(h + b1_ref[...], 0.0).astype(jnp.bfloat16)
    acc_ref[...] += jnp.dot(h, w2_ref[...], preferred_element_type=jnp.float32)

    @pl.when(hstep == pl.num_programs(1) - 1)
    def _():
        o_ref[...] = (acc_ref[...] + b2_ref[...]).astype(o_ref.dtype)


def mlp_pallas(x2d, w1p, b1p, w2p, b2p, n_out, *, out_dtype=jnp.float32):
    M, K = x2d.shape
    Kp, H = w1p.shape
    H2, Np = w2p.shape
    assert H == H2 and K <= Kp

    vmem_limit = _vmem_limit_bytes()
    budget = int(vmem_limit * 0.9)
    out_isz = np.dtype(out_dtype).itemsize

    tm = min(256, _round_up(M, 16))

    def vmem_est(th, with_acc):
        est = (2 * tm * Kp * 2        # x
               + 2 * Kp * th * 2      # W1 block
               + 2 * th * 4           # b1
               + 2 * th * Np * 2      # W2 block
               + 2 * Np * 4           # b2
               + 2 * tm * Np * out_isz)
        if with_acc:
            est += tm * Np * 4
        return est

    # Pick the largest hidden tile that keeps everything VMEM-resident.
    th = None
    for cand in (H, 512, 256, 128):
        if H % cand == 0 and vmem_est(cand, cand != H) <= budget:
            th = cand
            break

    if th is None:
        # TODO(synk): extreme sizes only — hidden activation round-trips HBM (as bf16).
        h = linear_pallas(x2d, w1p, b1p, H, apply_relu=True, out_dtype=jnp.bfloat16)
        return linear_pallas(h, w2p, b2p, n_out, apply_relu=False, out_dtype=out_dtype)

    Mp = _round_up(M, tm)
    xb = x2d if x2d.dtype == jnp.bfloat16 else x2d.astype(jnp.bfloat16)
    if Mp != M or Kp != K:
        xb = jnp.pad(xb, ((0, Mp - M), (0, Kp - K)))

    weight_passes = 1 if th == H else (Mp // tm)
    cost = pl.CostEstimate(
        flops=2 * Mp * H * Kp + 2 * Mp * Np * H,
        transcendentals=0,
        bytes_accessed=(Mp * Kp * 2
                        + (Kp * H * 2 + H * Np * 2) * weight_passes
                        + H * 4 + Np * 4 + Mp * Np * out_isz),
    )

    if th == H:
        out = pl.pallas_call(
            _mlp_fused_kernel,
            out_shape=jax.ShapeDtypeStruct((Mp, Np), out_dtype),
            grid_spec=pltpu.PrefetchScalarGridSpec(
                num_scalar_prefetch=0,
                grid=(Mp // tm,),
                in_specs=[
                    pl.BlockSpec((tm, Kp), lambda i: (i, 0)),
                    pl.BlockSpec((Kp, H), lambda i: (0, 0)),   # resident across M
                    pl.BlockSpec((1, H), lambda i: (0, 0)),
                    pl.BlockSpec((H, Np), lambda i: (0, 0)),   # resident across M
                    pl.BlockSpec((1, Np), lambda i: (0, 0)),
                ],
                out_specs=pl.BlockSpec((tm, Np), lambda i: (i, 0)),
            ),
            compiler_params=pltpu.CompilerParams(
                dimension_semantics=("parallel",),
                vmem_limit_bytes=vmem_limit,
            ),
            cost_estimate=cost,
        )(xb, w1p, b1p, w2p, b2p)
    else:
        out = pl.pallas_call(
            _mlp_htiled_kernel,
            out_shape=jax.ShapeDtypeStruct((Mp, Np), out_dtype),
            grid_spec=pltpu.PrefetchScalarGridSpec(
                num_scalar_prefetch=0,
                grid=(Mp // tm, H // th),
                in_specs=[
                    pl.BlockSpec((tm, Kp), lambda i, h: (i, 0)),
                    pl.BlockSpec((Kp, th), lambda i, h: (0, h)),
                    pl.BlockSpec((1, th), lambda i, h: (0, h)),
                    pl.BlockSpec((th, Np), lambda i, h: (h, 0)),
                    pl.BlockSpec((1, Np), lambda i, h: (0, 0)),
                ],
                out_specs=pl.BlockSpec((tm, Np), lambda i, h: (i, 0)),
                scratch_shapes=[pltpu.VMEM((tm, Np), jnp.float32)],
            ),
            compiler_params=pltpu.CompilerParams(
                dimension_semantics=("parallel", "arbitrary"),
                vmem_limit_bytes=vmem_limit,
            ),
            cost_estimate=cost,
        )(xb, w1p, b1p, w2p, b2p)

    if Mp != M or Np != n_out:
        out = out[:M, :n_out]
    return out


# ---------------------------------------------------------------------------
# ProjectionHead wrapper (parameter init + one-time weight prep in plain JAX)
# ---------------------------------------------------------------------------
class ProjectionHead:
    HIDDEN = 1024  # fixed in the PyTorch module

    def __init__(self, input_dim, output_dim, is_mlp=False, key=None):
        self.input_dim = input_dim
        self.output_dim = output_dim
        self.is_mlp = is_mlp
        if key is None:
            key = jax.random.PRNGKey(0)

        def init_linear(k, fan_in, fan_out):
            # PyTorch nn.Linear default init: U(-1/sqrt(fan_in), 1/sqrt(fan_in))
            kw, kb = jax.random.split(k)
            bound = 1.0 / float(np.sqrt(fan_in))
            w = jax.random.uniform(kw, (fan_in, fan_out), jnp.float32, -bound, bound)
            b = jax.random.uniform(kb, (fan_out,), jnp.float32, -bound, bound)
            return w, b

        if is_mlp:
            k1, k2 = jax.random.split(key)
            self.w1, self.b1 = init_linear(k1, input_dim, self.HIDDEN)
            self.w2, self.b2 = init_linear(k2, self.HIDDEN, output_dim)
            # bf16 cast + 128-padding done once, reused every forward.
            self.w1_prep, self.b1_prep = prepare_linear(self.w1, self.b1)
            self.w2_prep, self.b2_prep = prepare_linear(self.w2, self.b2)
        else:
            self.w1, self.b1 = init_linear(key, input_dim, output_dim)
            self.w1_prep, self.b1_prep = prepare_linear(self.w1, self.b1)

    def __call__(self, x):
        lead = x.shape[:-1]
        x2d = x.reshape(-1, self.input_dim)
        if self.is_mlp:
            y = mlp_pallas(x2d, self.w1_prep, self.b1_prep,
                           self.w2_prep, self.b2_prep, self.output_dim)
        else:
            y = linear_pallas(x2d, self.w1_prep, self.b1_prep, self.output_dim)
        return y.reshape(*lead, self.output_dim)

    # Pure-JAX f32 reference (module semantics).
    def reference(self, x):
        lead = x.shape[:-1]
        x2d = x.reshape(-1, self.input_dim)
        if self.is_mlp:
            h = jnp.maximum(x2d @ self.w1 + self.b1, 0.0)
            y = h @ self.w2 + self.b2
        else:
            y = x2d @ self.w1 + self.b1
        return y.reshape(*lead, self.output_dim)

    # Pure-JAX reference using the same bf16-in / f32-accumulate recipe as the kernel.
    def reference_matched(self, x):
        lead = x.shape[:-1]
        x2d = x.reshape(-1, self.input_dim).astype(jnp.bfloat16)
        if self.is_mlp:
            h = jnp.dot(x2d, self.w1.astype(jnp.bfloat16),
                        preferred_element_type=jnp.float32) + self.b1
            h = jnp.maximum(h, 0.0).astype(jnp.bfloat16)
            y = jnp.dot(h, self.w2.astype(jnp.bfloat16),
                        preferred_element_type=jnp.float32) + self.b2
        else:
            y = jnp.dot(x2d, self.w1.astype(jnp.bfloat16),
                        preferred_element_type=jnp.float32) + self.b1
        return y.reshape(*lead, self.output_dim)


if __name__ == "__main__":
    key = jax.random.PRNGKey(0)
    kx, kp1, kp2 = jax.random.split(key, 3)

    batch, seq, input_dim, output_dim = 2, 8, 32, 16
    x = jax.random.normal(kx, (batch, seq, input_dim), jnp.float32)

    # Plain linear head (is_mlp=False): resident-weight kernel, grid over M.
    head = ProjectionHead(input_dim, output_dim, is_mlp=False, key=kp1)
    y = jax.block_until_ready(head(x))
    assert y.shape == (batch, seq, output_dim)
    assert jnp.allclose(y, head.reference_matched(x), atol=1e-2, rtol=1e-2)
    assert jnp.allclose(y, head.reference(x), atol=5e-2, rtol=5e-2)

    # MLP head (Linear -> ReLU -> Linear with hidden=1024), fully fused kernel.
    head_mlp = ProjectionHead(input_dim, output_dim, is_mlp=True, key=kp2)
    y2 = jax.block_until_ready(head_mlp(x))
    assert y2.shape == (batch, seq, output_dim)
    assert jnp.allclose(y2, head_mlp.reference_matched(x), atol=1e-2, rtol=1e-2)
    assert jnp.allclose(y2, head_mlp.reference(x), atol=5e-2, rtol=5e-2)

    print("KERNEL_OK")
</pallas_src>

<mosaic_0001>
module attributes {stable_mosaic.version = 11 : i64} {
  func.func @_linear_resident_kernel(%arg0: i32, %arg1: memref<16x128xbf16, #tpu.memory_space<vmem>>, %arg2: memref<128x128xbf16, #tpu.memory_space<vmem>>, %arg3: memref<1x128xf32, #tpu.memory_space<vmem>>, %arg4: memref<16x128xf32, #tpu.memory_space<vmem>>) attributes {dimension_semantics = [#tpu.dimension_semantics<parallel>], iteration_bounds = array<i64: 1>, scalar_prefetch = 0 : i64, scratch_operands = 0 : i64, tpu.core_type = #tpu.core_type<tc>, window_params = [{transform_indices = @transform_0, window_bounds = array<i64: 16, 128>}, {pipeline_mode = #tpu.pipeline_mode<synchronous>, transform_indices = @transform_1, window_bounds = array<i64: 128, 128>}, {pipeline_mode = #tpu.pipeline_mode<synchronous>, transform_indices = @transform_2, window_bounds = array<i64: 1, 128>}, {transform_indices = @transform_3, window_bounds = array<i64: 16, 128>}]} {
    %c0 = arith.constant 0 : index
    %c0_0 = arith.constant 0 : index
    %0 = vector.load %arg1[%c0, %c0_0] : memref<16x128xbf16, #tpu.memory_space<vmem>>, vector<16x128xbf16>
    %c0_1 = arith.constant 0 : index
    %c0_2 = arith.constant 0 : index
    %1 = vector.load %arg2[%c0_1, %c0_2] : memref<128x128xbf16, #tpu.memory_space<vmem>>, vector<128x128xbf16>
    %cst = arith.constant dense<0.000000e+00> : vector<16x128xf32>
    %2 = tpu.matmul %0, %1, %cst {dimension_numbers = #tpu.dot_dimension_numbers<[1], [0], [0], [1], [0, 0, 1, 1], [], []>} : vector<16x128xbf16>, vector<128x128xbf16>, vector<16x128xf32> -> vector<16x128xf32>
    %c0_3 = arith.constant 0 : index
    %c0_4 = arith.constant 0 : index
    %3 = vector.load %arg3[%c0_3, %c0_4] : memref<1x128xf32, #tpu.memory_space<vmem>>, vector<1x128xf32>
    %4 = vector.broadcast %3 : vector<1x128xf32> to vector<16x128xf32>
    %5 = arith.addf %2, %4 : vector<16x128xf32>
    %c0_5 = arith.constant 0 : index
    %c0_6 = arith.constant 0 : index
    %6 = vector.load %arg4[%c0_5, %c0_6] : memref<16x128xf32, #tpu.memory_space<vmem>>, vector<16x128xf32>
    tpu.vector_store %arg4[%c0_5, %c0_6], %5 {strides = array<i32>} : memref<16x128xf32, #tpu.memory_space<vmem>>, vector<16x128xf32>,
    return
  }
  func.func @transform_0(%arg0: i32) -> (i32, i32) {
    %c0_i32 = arith.constant 0 : i32
    %c0_i32_0 = arith.constant 0 : i32
    return %arg0, %c0_i32 : i32, i32
  }
  func.func @transform_1(%arg0: i32) -> (i32, i32) {
    %c0_i32 = arith.constant 0 : i32
    %c0_i32_0 = arith.constant 0 : i32
    %c0_i32_1 = arith.constant 0 : i32
    return %c0_i32, %c0_i32_0 : i32, i32
  }
  func.func @transform_2(%arg0: i32) -> (i32, i32) {
    %c0_i32 = arith.constant 0 : i32
    %c0_i32_0 = arith.constant 0 : i32
    %c0_i32_1 = arith.constant 0 : i32
    return %c0_i32, %c0_i32_0 : i32, i32
  }
  func.func @transform_3(%arg0: i32) -> (i32, i32) {
    %c0_i32 = arith.constant 0 : i32
    %c0_i32_0 = arith.constant 0 : i32
    return %arg0, %c0_i32 : i32, i32
  }
}

</mosaic_0001>

<llo_original>
// kernel: tpu_custom_call.1
$region0: #{tpu_custom_call.1}
  #allocation0 [shape = 'u32[]', space=smem, size = 0x4, offset = 0x4, fixed_abs, tag = 'smem constant byte address 0x4 - core index']
  #allocation1 [shape = 'u32[144,128]{1,0:T(1,128)}', space=vmem, size = 0x12000, scoped, tag = 'internal scratch']
  %s0 = inlined_call_operand.hbm [shape: bf16[16,128], index: 0, kind: input, shape index: {}]
  %s1 = inlined_call_operand.hbm [shape: bf16[128,128], index: 1, kind: input, shape index: {}]
  %s2 = inlined_call_operand.vmem [shape: f32[1,128], index: 2, kind: input, shape index: {}]
  %s3 = inlined_call_operand.hbm [shape: f32[16,128], index: 3, kind: output, shape index: {}]
  %s4 = sld [smem:[#allocation0]]
  $region30: #{tpu_custom_call.1} parent=0
    _
  %s6 = ssub.s32 1, %s4
  %s7 = scalar_select 0, %s6, %s4
  $region1: #{tpu_custom_call.1} parent=0
    #allocation2 [shape = 'u8[4096]{0}', space=vmem, size = 0x1000, scoped, tag = 'input window, operand 0, single buffered']
    #allocation3 [shape = 's32[1]{0}', space=sflag, size = 0x4, scoped, tag = 'scoped memory for tpu_custom_call.1']
    #allocation4 [shape = 's32[1]{0}', space=sflag, size = 0x4, scoped, tag = 'scoped memory for tpu_custom_call.1']
    #allocation5 [shape = 'u8[32768]{0}', space=vmem, size = 0x8000, scoped, tag = 'input window, operand 1, single buffered']
    #allocation6 [shape = 's32[1]{0}', space=sflag, size = 0x4, scoped, tag = 'scoped memory for tpu_custom_call.1']
    #allocation7 [shape = 'u8[8192]{0}', space=vmem, size = 0x2000, scoped, tag = 'output window, operand 0, single buffered']
    %8 = vsyncpa [#allocation3], 0
    %9 = vsyncpa [#allocation6], 0
    %10 = vsyncpa [#allocation4], 0
    // Predicated region
    $region2: #{tpu_custom_call.1} parent=1 // pred_check
      _
    $region3: #{tpu_custom_call.1} parent=1 // pred_check_branch
      %12 = sbr.rel (0) target = $region5
    $region4: #{tpu_custom_call.1} parent=1 // pred_region
      %s14 = ssub.s32 128, 128
      %15 = vsyncadd [#allocation3], %s14
      %s16 = sshll.u32 [#allocation2], 4
      %s17 = int_to_ptr.vmem [resolvable:$true] %s16
      %22 = dma.hbm_to_vmem [thread:$0]  %s0, 128, %s17, [#allocation3], 64, 64, 4
    $region5: #{tpu_custom_call.1} parent=1 // pred_fallthru
      _
    // Predicated region
    $region6: #{tpu_custom_call.1} parent=1 // pred_check
      _
    $region7: #{tpu_custom_call.1} parent=1 // pred_check_branch
      %24 = sbr.rel (0) target = $region9
    $region8: #{tpu_custom_call.1} parent=1 // pred_region
      %s26 = ssub.s32 1024, 1024
      %27 = vsyncadd [#allocation6], %s26
      %s28 = sshll.u32 [#allocation5], 4
      %s29 = int_to_ptr.vmem [resolvable:$true] %s28
      %34 = dma.hbm_to_vmem [thread:$0]  %s1, 1024, %s29, [#allocation6], 64, 64, 4
    $region9: #{tpu_custom_call.1} parent=1 // pred_fallthru
      _
    // Predicated region
    $region10: #{tpu_custom_call.1} parent=1 // pred_check
      _
    $region11: #{tpu_custom_call.1} parent=1 // pred_check_branch
      %36 = sbr.rel (0) target = $region13
    $region12: #{tpu_custom_call.1} parent=1 // pred_region
      _
    $region13: #{tpu_custom_call.1} parent=1 // pred_fallthru
      _
    // Predicated region
    $region14: #{tpu_custom_call.1} parent=1 // pred_check
      _
    $region15: #{tpu_custom_call.1} parent=1 // pred_check_branch
      %38 = sbr.rel (0) target = $region17
    $region16: #{tpu_custom_call.1} parent=1 // pred_region
      %39 = dma.done [#allocation3], 128
    $region17: #{tpu_custom_call.1} parent=1 // pred_fallthru
      _
    // Predicated region
    $region18: #{tpu_custom_call.1} parent=1 // pred_check
      _
    $region19: #{tpu_custom_call.1} parent=1 // pred_check_branch
      %41 = sbr.rel (0) target = $region21
    $region20: #{tpu_custom_call.1} parent=1 // pred_region
      %42 = dma.done [#allocation6], 1024
    $region21: #{tpu_custom_call.1} parent=1 // pred_fallthru
      _
    %v44 = vld [vmem:[#allocation2] sm:$0xf]
    %v45 = vld [vmem:[#allocation2 + $0x4] sm:$0xf]
    %v46 = vld [vmem:[#allocation5] sm:$0xf]
    %v47 = vld [vmem:[#allocation5 + $0x4] sm:$0xf]
    %v48 = vld [vmem:[#allocation5 + $0x8] sm:$0xf]
    %v49 = vld [vmem:[#allocation5 + $0xc] sm:$0xf]
    %v50 = vld [vmem:[#allocation5 + $0x10] sm:$0xf]
    %v51 = vld [vmem:[#allocation5 + $0x14] sm:$0xf]
    %v52 = vld [vmem:[#allocation5 + $0x18] sm:$0xf]
    %v53 = vld [vmem:[#allocation5 + $0x1c] sm:$0xf]
    %v54 = vld [vmem:[#allocation5 + $0x20] sm:$0xf]
    %v55 = vld [vmem:[#allocation5 + $0x24] sm:$0xf]
    %v56 = vld [vmem:[#allocation5 + $0x28] sm:$0xf]
    %v57 = vld [vmem:[#allocation5 + $0x2c] sm:$0xf]
    %v58 = vld [vmem:[#allocation5 + $0x30] sm:$0xf]
    %v59 = vld [vmem:[#allocation5 + $0x34] sm:$0xf]
    %v60 = vld [vmem:[#allocation5 + $0x38] sm:$0xf]
    %v61 = vld [vmem:[#allocation5 + $0x3c] sm:$0xf]
    %v62 = vld [vmem:[%s2] sm:$0x1]
    %v64 = vlaneseq
    %v65 = vshrl.u32 %v64, 7
    %v66 = vsub.s32 0, %v65
    %v67 = vrot.slane %v62, %v66
    %v71 = vunpack.c.l.b16 %v44
    %v72 = vunpack.c.l.b16 %v45
    %v73 = vpack.c.b16 %v72, %v71
    %v91 = vunpack.c.l.b16 %v46
    %v92 = vunpack.c.l.b16 %v47
    %v93 = vunpack.c.l.b16 %v48
    %v94 = vunpack.c.l.b16 %v49
    %v95 = vunpack.c.l.b16 %v50
    %v96 = vunpack.c.l.b16 %v51
    %v97 = vunpack.c.l.b16 %v52
    %v98 = vunpack.c.l.b16 %v53
    %v99 = vunpack.c.l.b16 %v54
    %v100 = vunpack.c.l.b16 %v55
    %v101 = vunpack.c.l.b16 %v56
    %v102 = vunpack.c.l.b16 %v57
    %v103 = vunpack.c.l.b16 %v58
    %v104 = vunpack.c.l.b16 %v59
    %v105 = vunpack.c.l.b16 %v60
    %v106 = vunpack.c.l.b16 %v61
    %v107 = vpack.c.b16 %v92, %v91
    %v108 = vpack.c.b16 %v94, %v93
    %v109 = vpack.c.b16 %v96, %v95
    %v110 = vpack.c.b16 %v98, %v97
    %v111 = vpack.c.b16 %v100, %v99
    %v112 = vpack.c.b16 %v102, %v101
    %v113 = vpack.c.b16 %v104, %v103
    %v114 = vpack.c.b16 %v106, %v105
    %123 = vmatprep.subr.bf16.mxu0 0
    %124 = vmatpush1.bf16.msra.mxu0 %v107
    %125 = vmatprep.subr.bf16.mxu0 0
    %126 = vmatpush1.bf16.msra.mxu0 %v108
    %127 = vmatprep.subr.bf16.mxu0 0
    %128 = vmatpush1.bf16.msra.mxu0 %v109
    %129 = vmatprep.subr.bf16.mxu0 0
    %130 = vmatpush1.bf16.msra.mxu0 %v110
    %131 = vmatprep.subr.bf16.mxu0 0
    %132 = vmatpush1.bf16.msra.mxu0 %v111
    %133 = vmatprep.subr.bf16.mxu0 0
    %134 = vmatpush1.bf16.msra.mxu0 %v112
    %135 = vmatprep.subr.bf16.mxu0 0
    %136 = vmatpush1.bf16.msra.mxu0 %v113
    %137 = vmatprep.subr.bf16.mxu0 0
    %138 = vmatpush1.bf16.msra.mxu0 %v114
    %139 = vmatprep.subr.bf16.mxu0 0
    %140 = vmatpush1.bf16.msra.mxu0 0
    %141 = vmatprep.subr.bf16.mxu0 0
    %142 = vmatpush1.bf16.msra.mxu0 0
    %143 = vmatprep.subr.bf16.mxu0 0
    %144 = vmatpush1.bf16.msra.mxu0 0
    %145 = vmatprep.subr.bf16.mxu0 0
    %146 = vmatpush1.bf16.msra.mxu0 0
    %147 = vmatprep.subr.bf16.mxu0 0
    %148 = vmatpush1.bf16.msra.mxu0 0
    %149 = vmatprep.subr.bf16.mxu0 0
    %150 = vmatpush1.bf16.msra.mxu0 0
    %151 = vmatprep.subr.bf16.mxu0 0
    %152 = vmatpush1.bf16.msra.mxu0 0
    %153 = vmatprep.subr.bf16.mxu0 0
    %154 = vmatpush1.bf16.msra.mxu0 0
    %155 = vmatprep.mubr.bf16.mxu0 0
    %156 = vmatmul.mubr.bf16.gmra.mrb[0].mxu0 %v73
    %v157 = vpop.f32.mrb[0].mxu0
    %v158 = vadd.f32 %v67, %v157
    %v159 = vpop.f32.mrb[0].mxu0
    %v160 = vpop.f32.mrb[0].mxu0
    %v161 = vadd.f32 %v67, %v160
    %v162 = vpop.f32.mrb[0].mxu0
    %163 = vdwg.mxu0
    %164 = vst [vmem:[#allocation7] sm:$0xff] %v158
    %165 = vst [vmem:[#allocation7 + $0x8] sm:$0xff] %v161
    // Predicated region
    $region22: #{tpu_custom_call.1} parent=1 // pred_check
      _
    $region23: #{tpu_custom_call.1} parent=1 // pred_check_branch
      %167 = sbr.rel (0) target = $region25
    $region24: #{tpu_custom_call.1} parent=1 // pred_region
      %s169 = ssub.s32 256, 256
      %170 = vsyncadd [#allocation4], %s169
      %s171 = sshll.u32 [#allocation7], 4
      %s172 = int_to_ptr.vmem [resolvable:$true] %s171
      %177 = dma.vmem_to_hbm [thread:$0]  %s172, 256, %s3, [#allocation4], 128, 128, 8
    $region25: #{tpu_custom_call.1} parent=1 // pred_fallthru
      _
    // Predicated region
    $region26: #{tpu_custom_call.1} parent=1 // pred_check
      _
    $region27: #{tpu_custom_call.1} parent=1 // pred_check_branch
      %179 = sbr.rel (0) target = $region29
    $region28: #{tpu_custom_call.1} parent=1 // pred_region
      %180 = dma.done [#allocation4], 256
    $region29: #{tpu_custom_call.1} parent=1 // pred_fallthru
      _
    %181 = vsyncpa [#allocation3], 1
    %182 = vsyncpa [#allocation6], 1
    %183 = vsyncpa [#allocation4], 1

</llo_original>
